<compile_context>
chip_gen: v6e
topology: v6e:2x2x1
jax: 0.10.0
libtpu: 0.0.40
codegen_flags: <defaults>
</compile_context>

<pallas_src>
import jax
import jax.numpy as jnp
from jax.experimental import pallas as pl
from jax.experimental.pallas import tpu as pltpu


def _mish(z):
    # mish(z) = z * tanh(softplus(z)) = z * n/(n+2) with n = e^z (e^z + 2).
    # Single exp instead of exp+log+tanh; clamp + where guard avoids overflow.
    zc = jnp.minimum(z, 20.0)
    e = jnp.exp(zc)
    n = e * (e + 2.0)
    t = n / (n + 2.0)
    return jnp.where(z > 20.0, z, z * t)


def _transition_kernel(x_ref, scale_ref, shift_ref, w_ref, o_ref):
    # x_ref:     (TB, THq, 2, Wq, 2*Cin)  channels-last; H-pool-pair on the
    #            small leading axis, W-pool-pair folded into the lane axis.
    # scale_ref: (1, 2*Cin)  folded BN scale (gamma / sqrt(var+eps)), tiled x2
    # shift_ref: (1, 2*Cin)  folded BN shift (beta - mean*scale),     tiled x2
    # w_ref:     (Cin, CoutP) 1x1 conv weight, pre-transposed, pre-scaled 0.25
    # o_ref:     (TB, THq, Wq, CoutP)
    x = x_ref[...]
    z = x * scale_ref[...] + shift_ref[...]          # BN (eval), lane broadcast
    act = _mish(z)                                   # Mish (1 exp + 1 recip)

    # 2x2 average pool: H-pair = leading axis 2 (cheap vreg adds), W-pair =
    # lane halves.  The 1/4 factor lives in the conv weight.
    s = act[:, :, 0] + act[:, :, 1]                  # (TB, THq, Wq, 2*Cin)
    cin = w_ref.shape[0]
    pooled = s[..., :cin] + s[..., cin:]             # (TB, THq, Wq, Cin)

    tb, thq, wq, _ = pooled.shape
    coutp = o_ref.shape[-1]
    # Pool-before-conv is valid only because the conv is bias-free and the
    # pool is a plain mean.
    lhs = pooled.reshape(tb * thq * wq, cin).astype(w_ref.dtype)
    y = jnp.dot(lhs, w_ref[...], preferred_element_type=jnp.float32)
    o_ref[...] = y.reshape(tb, thq, wq, coutp).astype(o_ref.dtype)


def _vmem_budget():
    """(block working-set budget, vmem_limit_bytes), derived from the chip."""
    cap = 64 * 1024 * 1024  # conservative fallback (v7x per-TC VMEM)
    try:
        cap = int(getattr(pltpu.get_tpu_info(), "vmem_capacity_bytes", cap))
    except Exception:
        pass
    return int(0.40 * cap), int(0.70 * cap)


def _divisors(n):
    return [d for d in range(1, n + 1) if n % d == 0]


def _pick_tiles(B, Hq, Wq, Cin, CoutP, budget_bytes):
    """Pick (TB, THq): batch/Hq block sizes.  Largest block under the VMEM
    budget while keeping enough grid steps for pipelining + megacore."""
    in_b = 2 * Wq * 2 * Cin * 4          # f32 input bytes per (b, hq) unit
    out_b = Wq * CoutP * 4               # f32 output bytes per (b, hq) unit
    per_unit = 2 * (in_b + out_b)        # double-buffered in + out
    const_b = 2 * (Cin * CoutP + 4 * Cin) * 4
    total_units = B * Hq
    target_steps = min(8, total_units)
    best = None
    for tb in _divisors(B):
        for thq in _divisors(Hq):
            steps = (B // tb) * (Hq // thq)
            block_bytes = tb * thq * per_unit + const_b
            if block_bytes > budget_bytes:
                continue
            key = (steps >= target_steps, tb * thq)
            if best is None or key > best[0]:
                best = (key, tb, thq)
    if best is None:
        return 1, 1
    return best[1], best[2]


def _pad_cout(cout):
    # Lane-dense stores: pad Cout to a multiple of 128 only when the byte
    # inflation is small (<= 2x).  Typical DenseNet transitions have Cout>=128.
    if cout % 128 == 0 or cout < 64:
        return cout
    return ((cout + 127) // 128) * 128


def transition_forward(x, gamma, beta, running_mean, running_var, conv_w,
                       eps=1e-5, matmul_in_bf16=None, out_nhwc=False):
    """x: (B, Cin, H, W) f32 NCHW.  conv_w: (Cout, Cin, 1, 1) (or (Cout, Cin)).
    BN params: (Cin,). Returns (B, Cout, H//2, W//2) NCHW (or NHWC)."""
    B, Cin, H, W = x.shape
    Cout = conv_w.shape[0]
    assert H % 2 == 0 and W % 2 == 0, "AvgPool2d(2) path assumes even H, W"
    Hq, Wq = H // 2, W // 2

    if matmul_in_bf16 is None:
        matmul_in_bf16 = Cin >= 256     # bf16 MXU for real DenseNet sizes
    w_dtype = jnp.bfloat16 if matmul_in_bf16 else jnp.float32

    # Fold eval-mode BN into a per-channel affine, tiled over the W-pool-pair
    # (lane axis carries 2*Cin).
    scale = (gamma * jax.lax.rsqrt(running_var + eps)).astype(jnp.float32)
    shift = (beta - running_mean * scale).astype(jnp.float32)
    scale2 = jnp.tile(scale, 2).reshape(1, 2 * Cin)
    shift2 = jnp.tile(shift, 2).reshape(1, 2 * Cin)

    # 1x1 conv weight (in, out); fold the 2x2-average 1/4 factor in.
    CoutP = _pad_cout(Cout)
    wt = conv_w.reshape(Cout, Cin).T.astype(jnp.float32) * 0.25
    if CoutP != Cout:
        wt = jnp.pad(wt, ((0, 0), (0, CoutP - Cout)))
    wt = wt.astype(w_dtype)

    # NCHW -> NHWC (single XLA pass); the remaining reshapes are free
    # row-major views that split the 2x2 pool window.
    xh = jnp.transpose(x, (0, 2, 3, 1)).astype(jnp.float32)   # (B, H, W, Cin)
    xp = xh.reshape(B, Hq, 2, Wq, 2 * Cin)

    budget, vmem_limit = _vmem_budget()
    TB, THq = _pick_tiles(B, Hq, Wq, Cin, CoutP, budget)
    grid = (B // TB, Hq // THq)

    elem = B * Cin * H * W
    cost = pl.CostEstimate(
        flops=int(8 * elem + 2 * B * Hq * Wq * Cin * CoutP),
        transcendentals=int(2 * elem),
        bytes_accessed=int(4 * (elem + B * Hq * Wq * CoutP
                                + Cin * CoutP + 4 * Cin)),
    )

    # Note: scale/shift/weight have constant index_maps (no per-step re-DMA);
    # they are tiny relative to the activation budget so their double buffer
    # is left alone rather than forcing pipeline_mode.
    out = pl.pallas_call(
        _transition_kernel,
        out_shape=jax.ShapeDtypeStruct((B, Hq, Wq, CoutP), jnp.float32),
        grid_spec=pltpu.PrefetchScalarGridSpec(
            num_scalar_prefetch=0,
            grid=grid,
            in_specs=[
                pl.BlockSpec((TB, THq, 2, Wq, 2 * Cin),
                             lambda b, h: (b, h, 0, 0, 0)),
                pl.BlockSpec((1, 2 * Cin), lambda b, h: (0, 0)),
                pl.BlockSpec((1, 2 * Cin), lambda b, h: (0, 0)),
                pl.BlockSpec((Cin, CoutP), lambda b, h: (0, 0)),
            ],
            out_specs=pl.BlockSpec((TB, THq, Wq, CoutP),
                                   lambda b, h: (b, h, 0, 0)),
        ),
        compiler_params=pltpu.CompilerParams(
            dimension_semantics=("parallel", "parallel"),
            vmem_limit_bytes=vmem_limit,
        ),
        cost_estimate=cost,
    )(xp, scale2, shift2, wt)

    if CoutP != Cout:
        out = out[..., :Cout]
    if out_nhwc:
        return out                                   # (B, Hq, Wq, Cout)
    return jnp.transpose(out, (0, 3, 1, 2))          # (B, Cout, Hq, Wq)


def transition_ref(x, gamma, beta, running_mean, running_var, conv_w, eps=1e-5):
    """Pure-JAX reference matching the PyTorch Transition forward (eval BN),
    using the canonical softplus/tanh Mish form."""
    inv = jax.lax.rsqrt(running_var + eps)
    xn = (x - running_mean[None, :, None, None]) * inv[None, :, None, None]
    xn = xn * gamma[None, :, None, None] + beta[None, :, None, None]
    sp = jnp.maximum(xn, 0.0) + jnp.log(1.0 + jnp.exp(-jnp.abs(xn)))
    act = xn * jnp.tanh(sp)                                      # Mish
    w2 = conv_w.reshape(conv_w.shape[0], conv_w.shape[1])        # (Cout, Cin)
    out = jnp.einsum('oc,bchw->bohw', w2, act)                   # 1x1 conv
    B, Co, H, W = out.shape
    return out.reshape(B, Co, H // 2, 2, W // 2, 2).mean(axis=(3, 5))


if __name__ == "__main__":
    key = jax.random.PRNGKey(0)
    B, Cin, H, W = 2, 16, 16, 16
    Cout = 8

    k_x, k_g, k_b, k_m, k_v, k_w = jax.random.split(key, 6)
    x = jax.random.normal(k_x, (B, Cin, H, W), dtype=jnp.float32)
    gamma = 0.5 + jax.random.uniform(k_g, (Cin,), dtype=jnp.float32)
    beta = 0.1 * jax.random.normal(k_b, (Cin,), dtype=jnp.float32)
    running_mean = 0.1 * jax.random.normal(k_m, (Cin,), dtype=jnp.float32)
    running_var = 0.5 + jax.random.uniform(k_v, (Cin,), dtype=jnp.float32)
    conv_w = 0.1 * jax.random.normal(k_w, (Cout, Cin, 1, 1), dtype=jnp.float32)

    ref = transition_ref(x, gamma, beta, running_mean, running_var, conv_w)

    # f32-matmul path (default for small Cin): tight check.
    out = transition_forward(x, gamma, beta, running_mean, running_var, conv_w)
    out = jax.block_until_ready(out)
    assert out.shape == (B, Cout, H // 2, W // 2)
    assert jnp.allclose(out, ref, atol=1e-4, rtol=1e-4), "mismatch (f32 path)"

    # bf16-MXU path (production default for Cin >= 256): looser check.
    out_bf16 = transition_forward(x, gamma, beta, running_mean, running_var,
                                  conv_w, matmul_in_bf16=True)
    out_bf16 = jax.block_until_ready(out_bf16)
    assert jnp.allclose(out_bf16, ref, atol=5e-2, rtol=5e-2), \
        "mismatch (bf16 path)"

    print("KERNEL_OK")
</pallas_src>

<mosaic_0001>
module attributes {stable_mosaic.version = 11 : i64} {
  func.func @_transition_kernel(%arg0: i32, %arg1: i32, %arg2: memref<1x2x2x8x32xf32, #tpu.memory_space<vmem>>, %arg3: memref<1x32xf32, #tpu.memory_space<vmem>>, %arg4: memref<1x32xf32, #tpu.memory_space<vmem>>, %arg5: memref<16x8xf32, #tpu.memory_space<vmem>>, %arg6: memref<1x2x8x8xf32, #tpu.memory_space<vmem>>) attributes {dimension_semantics = [#tpu.dimension_semantics<parallel>, #tpu.dimension_semantics<parallel>], iteration_bounds = array<i64: 2, 4>, scalar_prefetch = 0 : i64, scratch_operands = 0 : i64, tpu.core_type = #tpu.core_type<tc>, window_params = [{transform_indices = @transform_0, window_bounds = array<i64: 1, 2, 2, 8, 32>}, {pipeline_mode = #tpu.pipeline_mode<synchronous>, transform_indices = @transform_1, window_bounds = array<i64: 1, 32>}, {pipeline_mode = #tpu.pipeline_mode<synchronous>, transform_indices = @transform_2, window_bounds = array<i64: 1, 32>}, {pipeline_mode = #tpu.pipeline_mode<synchronous>, transform_indices = @transform_3, window_bounds = array<i64: 16, 8>}, {transform_indices = @transform_4, window_bounds = array<i64: 1, 2, 8, 8>}]} {
    %c0 = arith.constant 0 : index
    %c0_0 = arith.constant 0 : index
    %c0_1 = arith.constant 0 : index
    %c0_2 = arith.constant 0 : index
    %c0_3 = arith.constant 0 : index
    %0 = vector.load %arg2[%c0, %c0_0, %c0_1, %c0_2, %c0_3] : memref<1x2x2x8x32xf32, #tpu.memory_space<vmem>>, vector<1x2x2x8x32xf32>
    %c0_4 = arith.constant 0 : index
    %c0_5 = arith.constant 0 : index
    %1 = vector.load %arg3[%c0_4, %c0_5] : memref<1x32xf32, #tpu.memory_space<vmem>>, vector<1x32xf32>
    %2 = vector.shape_cast %1 : vector<1x32xf32> to vector<1x1x1x1x32xf32>
    %3 = vector.broadcast %2 : vector<1x1x1x1x32xf32> to vector<1x2x2x8x32xf32>
    %4 = arith.mulf %0, %3 : vector<1x2x2x8x32xf32>
    %c0_6 = arith.constant 0 : index
    %c0_7 = arith.constant 0 : index
    %5 = vector.load %arg4[%c0_6, %c0_7] : memref<1x32xf32, #tpu.memory_space<vmem>>, vector<1x32xf32>
    %6 = vector.shape_cast %5 : vector<1x32xf32> to vector<1x1x1x1x32xf32>
    %7 = vector.broadcast %6 : vector<1x1x1x1x32xf32> to vector<1x2x2x8x32xf32>
    %8 = arith.addf %4, %7 : vector<1x2x2x8x32xf32>
    %cst = arith.constant 2.000000e+01 : f32
    %9 = vector.broadcast %cst : f32 to vector<1x2x2x8x32xf32>
    %10 = arith.minimumf %8, %9 : vector<1x2x2x8x32xf32>
    %11 = math.exp %10 : vector<1x2x2x8x32xf32>
    %cst_8 = arith.constant 2.000000e+00 : f32
    %12 = vector.broadcast %cst_8 : f32 to vector<1x2x2x8x32xf32>
    %13 = arith.addf %11, %12 : vector<1x2x2x8x32xf32>
    %14 = arith.mulf %11, %13 : vector<1x2x2x8x32xf32>
    %cst_9 = arith.constant 2.000000e+00 : f32
    %15 = vector.broadcast %cst_9 : f32 to vector<1x2x2x8x32xf32>
    %16 = arith.addf %14, %15 : vector<1x2x2x8x32xf32>
    %17 = arith.divf %14, %16 : vector<1x2x2x8x32xf32>
    %cst_10 = arith.constant 2.000000e+01 : f32
    %18 = vector.broadcast %cst_10 : f32 to vector<1x2x2x8x32xf32>
    %19 = arith.cmpf ogt, %8, %18 : vector<1x2x2x8x32xf32>
    %20 = arith.mulf %8, %17 : vector<1x2x2x8x32xf32>
    %21 = arith.select %19, %8, %20 : vector<1x2x2x8x32xi1>, vector<1x2x2x8x32xf32>
    %22 = vector.extract_strided_slice %21 {offsets = [0, 0, 0, 0, 0], sizes = [1, 2, 1, 8, 32], strides = [1, 1, 1, 1, 1]} : vector<1x2x2x8x32xf32> to vector<1x2x1x8x32xf32>
    %23 = vector.shape_cast %22 : vector<1x2x1x8x32xf32> to vector<1x2x8x32xf32>
    %24 = vector.extract_strided_slice %21 {offsets = [0, 0, 1, 0, 0], sizes = [1, 2, 1, 8, 32], strides = [1, 1, 1, 1, 1]} : vector<1x2x2x8x32xf32> to vector<1x2x1x8x32xf32>
    %25 = vector.shape_cast %24 : vector<1x2x1x8x32xf32> to vector<1x2x8x32xf32>
    %26 = arith.addf %23, %25 : vector<1x2x8x32xf32>
    %27 = vector.extract_strided_slice %26 {offsets = [0, 0, 0, 0], sizes = [1, 2, 8, 16], strides = [1, 1, 1, 1]} : vector<1x2x8x32xf32> to vector<1x2x8x16xf32>
    %28 = vector.extract_strided_slice %26 {offsets = [0, 0, 0, 16], sizes = [1, 2, 8, 16], strides = [1, 1, 1, 1]} : vector<1x2x8x32xf32> to vector<1x2x8x16xf32>
    %29 = arith.addf %27, %28 : vector<1x2x8x16xf32>
    %30 = vector.shape_cast %29 : vector<1x2x8x16xf32> to vector<16x16xf32>
    %c0_11 = arith.constant 0 : index
    %c0_12 = arith.constant 0 : index
    %31 = vector.load %arg5[%c0_11, %c0_12] : memref<16x8xf32, #tpu.memory_space<vmem>>, vector<16x8xf32>
    %cst_13 = arith.constant dense<0.000000e+00> : vector<16x8xf32>
    %32 = tpu.matmul %30, %31, %cst_13 {dimension_numbers = #tpu.dot_dimension_numbers<[1], [0], [0], [1], [0, 0, 1, 1], [], []>} : vector<16x16xf32>, vector<16x8xf32>, vector<16x8xf32> -> vector<16x8xf32>
    %33 = vector.shape_cast %32 : vector<16x8xf32> to vector<1x2x8x8xf32>
    %c0_14 = arith.constant 0 : index
    %c0_15 = arith.constant 0 : index
    %c0_16 = arith.constant 0 : index
    %c0_17 = arith.constant 0 : index
    %34 = vector.load %arg6[%c0_14, %c0_15, %c0_16, %c0_17] : memref<1x2x8x8xf32, #tpu.memory_space<vmem>>, vector<1x2x8x8xf32>
    tpu.vector_store %arg6[%c0_14, %c0_15, %c0_16, %c0_17], %33 {strides = array<i32>} : memref<1x2x8x8xf32, #tpu.memory_space<vmem>>, vector<1x2x8x8xf32>,
    return
  }
  func.func @transform_0(%arg0: i32, %arg1: i32) -> (i32, i32, i32, i32, i32) {
    %c0_i32 = arith.constant 0 : i32
    %c0_i32_0 = arith.constant 0 : i32
    %c0_i32_1 = arith.constant 0 : i32
    %c0_i32_2 = arith.constant 0 : i32
    return %arg0, %arg1, %c0_i32, %c0_i32_0, %c0_i32_1 : i32, i32, i32, i32, i32
  }
  func.func @transform_1(%arg0: i32, %arg1: i32) -> (i32, i32) {
    %c0_i32 = arith.constant 0 : i32
    %c0_i32_0 = arith.constant 0 : i32
    %c0_i32_1 = arith.constant 0 : i32
    return %c0_i32, %c0_i32_0 : i32, i32
  }
  func.func @transform_2(%arg0: i32, %arg1: i32) -> (i32, i32) {
    %c0_i32 = arith.constant 0 : i32
    %c0_i32_0 = arith.constant 0 : i32
    %c0_i32_1 = arith.constant 0 : i32
    return %c0_i32, %c0_i32_0 : i32, i32
  }
  func.func @transform_3(%arg0: i32, %arg1: i32) -> (i32, i32) {
    %c0_i32 = arith.constant 0 : i32
    %c0_i32_0 = arith.constant 0 : i32
    %c0_i32_1 = arith.constant 0 : i32
    return %c0_i32, %c0_i32_0 : i32, i32
  }
  func.func @transform_4(%arg0: i32, %arg1: i32) -> (i32, i32, i32, i32) {
    %c0_i32 = arith.constant 0 : i32
    %c0_i32_0 = arith.constant 0 : i32
    %c0_i32_1 = arith.constant 0 : i32
    return %arg0, %arg1, %c0_i32, %c0_i32_0 : i32, i32, i32, i32
  }
}

</mosaic_0001>

<llo_original>
// kernel: tpu_custom_call.1
$region0: #{tpu_custom_call.1}
  #allocation0 [shape = 'u32[]', space=smem, size = 0x4, offset = 0x4, fixed_abs, tag = 'smem constant byte address 0x4 - core index']
  #allocation1 [shape = 'u32[144,128]{1,0:T(1,128)}', space=vmem, size = 0x12000, scoped, tag = 'internal scratch']
  %s0 = inlined_call_operand.hbm [shape: f32[2,8,2,8,32], index: 0, kind: input, shape index: {}]
  %s1 = inlined_call_operand.vmem [shape: f32[1,32], index: 1, kind: input, shape index: {}]
  %s2 = inlined_call_operand.vmem [shape: f32[1,32], index: 2, kind: input, shape index: {}]
  %s3 = inlined_call_operand.vmem [shape: f32[16,8], index: 3, kind: input, shape index: {}]
  %s4 = inlined_call_operand.hbm [shape: f32[2,8,8,8], index: 4, kind: output, shape index: {}]
  %s5 = sld [smem:[#allocation0]]
  $region53: #{tpu_custom_call.1} parent=0
    _
  %s7 = ssub.s32 1, %s5
  %s8 = scalar_select 0, %s7, %s5
  $region1: #{tpu_custom_call.1} parent=0
    #allocation2 [shape = 'u8[32768]{0}', space=vmem, size = 0x8000, scoped, tag = 'input window, operand 0']
    #allocation3 [shape = 's32[2]{0}', space=sflag, size = 0x8, scoped, tag = 'scoped memory for tpu_custom_call.1']
    #allocation4 [shape = 's32[2]{0}', space=sflag, size = 0x8, scoped, tag = 'scoped memory for tpu_custom_call.1']
    #allocation5 [shape = 'u8[16384]{0}', space=vmem, size = 0x4000, scoped, tag = 'output window, operand 0']
    %9 = vsyncpa [#allocation3], 0
    %s10 = scalar_lea.sflag [#allocation3], 1
    %11 = vsyncpa %s10, 0
    %12 = vsyncpa [#allocation4], 0
    %s13 = scalar_lea.sflag [#allocation4], 1
    %14 = vsyncpa %s13, 0
    loop: start=0, step=1, limit=10
    $region2: #{tpu_custom_call.1} parent=1 // loop_pre_header
      _
    $region3: #{tpu_custom_call.1} parent=1 // loop_header
      %s16 = sphi 0, %s20
      %p17 = scmp.ge.s32.totalorder %s16, 10
      %s23 = sphi 0, %s35
      %s24 = sphi 0, %s31
      %s25 = sphi 0, %s23
      %s26 = sphi 0, %s24
      %s27 = sphi 0, %s25
      %s28 = sphi 0, %s26
      %s40 = sphi 0, %s42
      %s43 = sphi 0, %s40
      %s44 = sphi 0, %s43
      %s60 = sphi 0, %s44
      %s64 = sphi 0, %s64
      %s66 = sphi 0, %s64
      %s67 = sphi 0, %s66
      %s81 = sphi 0, %s67
      %s85 = sphi 0, %s85
      %s87 = sphi 0, %s85
      %s88 = sphi 0, %s87
      %s102 = sphi 0, %s88
      %s106 = sphi 0, %s106
      %s108 = sphi 0, %s106
      %s109 = sphi 0, %s108
      %s123 = sphi 0, %s109
      %s131 = sphi 0, %s133
      %s134 = sphi 0, %s131
      %s135 = sphi 0, %s134
      %s151 = sphi 0, %s135
    $region4: #{tpu_custom_call.1} parent=1 // loop_header_branch
      %19 = sbr.rel (%p17) target = $region8
    $region5: #{tpu_custom_call.1} parent=1 // loop_body
      %s21 = ssub.s32 %s16, 1
      %s22 = ssub.s32 %s16, 2
      %s29 = sadd.s32 1, %s24
      %p30 = scmp.ge.s32.totalorder %s29, 4
      %s31 = scalar_select %p30, 0, %s29
      %s32 = sadd.s32 1, %s23
      %s33 = scalar_select %p30, %s32, %s23
      %p34 = scmp.ge.s32.totalorder %s33, 2
      %s35 = scalar_select %p34, 0, %s33
      %s36 = ssub.s32 %s23, %s35
      %s37 = ssub.s32 %s24, %s31
      %s38 = sor.u32 %s36, %s37
      %p39 = scmp.eq.s32.totalorder %s38, 0
      %s41 = sadd.s32 %s40, 1
      %s42 = scalar_select %p39, %s40, %s41
      %p45 = pneg %p39
      %p46 = scmp.eq.s32.totalorder %s16, 7
      %p47 = por %p45, %p46
      %p48 = scmp.ne.s32.totalorder %s40, %s43
      %p49 = scmp.eq.s32.totalorder %s16, 0
      %p50 = por %p48, %p49
      %p51 = scmp.ne.s32.totalorder %s40, %s43
      %p52 = scmp.eq.s32.totalorder %s21, 7
      %p53 = por %p51, %p52
      %p54 = scmp.ne.s32.totalorder %s43, %s44
      %p55 = scmp.eq.s32.totalorder %s21, 0
      %p56 = por %p54, %p55
      %p57 = scmp.ne.s32.totalorder %s43, %s44
      %p58 = scmp.eq.s32.totalorder %s22, 7
      %p59 = por %p57, %p58
      %p61 = scmp.ne.s32.totalorder %s44, %s60
      %p62 = scmp.eq.s32.totalorder %s22, 0
      %p63 = por %p61, %p62
      %s65 = sadd.s32 %s64, 1
      %p68 = scmp.eq.s32.totalorder %s16, 7
      %p69 = scmp.ne.s32.totalorder %s64, %s66
      %p70 = scmp.eq.s32.totalorder %s16, 0
      %p71 = por %p69, %p70
      %p72 = scmp.ne.s32.totalorder %s64, %s66
      %p73 = scmp.eq.s32.totalorder %s21, 7
      %p74 = por %p72, %p73
      %p75 = scmp.ne.s32.totalorder %s66, %s67
      %p76 = scmp.eq.s32.totalorder %s21, 0
      %p77 = por %p75, %p76
      %p78 = scmp.ne.s32.totalorder %s66, %s67
      %p79 = scmp.eq.s32.totalorder %s22, 7
      %p80 = por %p78, %p79
      %p82 = scmp.ne.s32.totalorder %s67, %s81
      %p83 = scmp.eq.s32.totalorder %s22, 0
      %p84 = por %p82, %p83
      %s86 = sadd.s32 %s85, 1
      %p89 = scmp.eq.s32.totalorder %s16, 7
      %p90 = scmp.ne.s32.totalorder %s85, %s87
      %p91 = scmp.eq.s32.totalorder %s16, 0
      %p92 = por %p90, %p91
      %p93 = scmp.ne.s32.totalorder %s85, %s87
      %p94 = scmp.eq.s32.totalorder %s21, 7
      %p95 = por %p93, %p94
      %p96 = scmp.ne.s32.totalorder %s87, %s88
      %p97 = scmp.eq.s32.totalorder %s21, 0
      %p98 = por %p96, %p97
      %p99 = scmp.ne.s32.totalorder %s87, %s88
      %p100 = scmp.eq.s32.totalorder %s22, 7
      %p101 = por %p99, %p100
      %p103 = scmp.ne.s32.totalorder %s88, %s102
      %p104 = scmp.eq.s32.totalorder %s22, 0
      %p105 = por %p103, %p104
      %s107 = sadd.s32 %s106, 1
      %p110 = scmp.eq.s32.totalorder %s16, 7
      %p111 = scmp.ne.s32.totalorder %s106, %s108
      %p112 = scmp.eq.s32.totalorder %s16, 0
      %p113 = por %p111, %p112
      %p114 = scmp.ne.s32.totalorder %s106, %s108
      %p115 = scmp.eq.s32.totalorder %s21, 7
      %p116 = por %p114, %p115
      %p117 = scmp.ne.s32.totalorder %s108, %s109
      %p118 = scmp.eq.s32.totalorder %s21, 0
      %p119 = por %p117, %p118
      %p120 = scmp.ne.s32.totalorder %s108, %s109
      %p121 = scmp.eq.s32.totalorder %s22, 7
      %p122 = por %p120, %p121
      %p124 = scmp.ne.s32.totalorder %s109, %s123
      %p125 = scmp.eq.s32.totalorder %s22, 0
      %p126 = por %p124, %p125
      %s127 = ssub.s32 %s23, %s35
      %s128 = ssub.s32 %s24, %s31
      %s129 = sor.u32 %s127, %s128
      %p130 = scmp.eq.s32.totalorder %s129, 0
      %s132 = sadd.s32 %s131, 1
      %s133 = scalar_select %p130, %s131, %s132
      %p136 = pneg %p130
      %p137 = scmp.eq.s32.totalorder %s16, 7
      %p138 = por %p136, %p137
      %p139 = scmp.ne.s32.totalorder %s131, %s134
      %p140 = scmp.eq.s32.totalorder %s16, 0
      %p141 = por %p139, %p140
      %p142 = scmp.ne.s32.totalorder %s131, %s134
      %p143 = scmp.eq.s32.totalorder %s21, 7
      %p144 = por %p142, %p143
      %p145 = scmp.ne.s32.totalorder %s134, %s135
      %p146 = scmp.eq.s32.totalorder %s21, 0
      %p147 = por %p145, %p146
      %p148 = scmp.ne.s32.totalorder %s134, %s135
      %p149 = scmp.eq.s32.totalorder %s22, 7
      %p150 = por %p148, %p149
      %p152 = scmp.ne.s32.totalorder %s135, %s151
      %p153 = scmp.eq.s32.totalorder %s22, 0
      %p154 = por %p152, %p153
      %p155 = scmp.le.s32.totalorder 1, %s16
      %p156 = scmp.lt.s32.totalorder %s16, 9
      %p157 = pnand %p155, %p156
      %p158 = pneg %p157
      // Predicated region
      $region9: #{tpu_custom_call.1} parent=5 // pred_check
        _
      $region10: #{tpu_custom_call.1} parent=5 // pred_check_branch
        %160 = sbr.rel (%p157) target = $region12
      $region11: #{tpu_custom_call.1} parent=5 // pred_region
        %s161 = ssub.s32 %s16, 1
        // Predicated region
        $region13: #{tpu_custom_call.1} parent=11 // pred_check
          %p162 = pneg %p77
        $region14: #{tpu_custom_call.1} parent=11 // pred_check_branch
          %164 = sbr.rel (%p162) target = $region16
        $region15: #{tpu_custom_call.1} parent=11 // pred_region
          _
        $region16: #{tpu_custom_call.1} parent=11 // pred_fallthru
          _
        // Predicated region
        $region17: #{tpu_custom_call.1} parent=11 // pred_check
          %p165 = pneg %p98
        $region18: #{tpu_custom_call.1} parent=11 // pred_check_branch
          %167 = sbr.rel (%p165) target = $region20
        $region19: #{tpu_custom_call.1} parent=11 // pred_region
          _
        $region20: #{tpu_custom_call.1} parent=11 // pred_fallthru
          _
        // Predicated region
        $region21: #{tpu_custom_call.1} parent=11 // pred_check
          %p168 = pneg %p119
        $region22: #{tpu_custom_call.1} parent=11 // pred_check_branch
          %170 = sbr.rel (%p168) target = $region24
        $region23: #{tpu_custom_call.1} parent=11 // pred_region
          _
        $region24: #{tpu_custom_call.1} parent=11 // pred_fallthru
          _
      $region12: #{tpu_custom_call.1} parent=5 // pred_fallthru
        _
      %p171 = scmp.lt.s32.totalorder %s16, 8
      // Predicated region
      $region25: #{tpu_custom_call.1} parent=5 // pred_check
        %p172 = pneg %p171
      $region26: #{tpu_custom_call.1} parent=5 // pred_check_branch
        %174 = sbr.rel (%p172) target = $region28
      $region27: #{tpu_custom_call.1} parent=5 // pred_region
        // Predicated region
        $region29: #{tpu_custom_call.1} parent=27 // pred_check
          %p175 = pneg %p50
        $region30: #{tpu_custom_call.1} parent=27 // pred_check_branch
          %177 = sbr.rel (%p175) target = $region32
        $region31: #{tpu_custom_call.1} parent=27 // pred_region
          %s178 = sand.u32 %s40, 1
          %s179 = scalar_lea.sflag [#allocation3], %s178
          %s180 = sand.u32 %s40, 1
          %s181 = smul.addr %s180, 32
          %s182 = scalar_lea.vmem [#allocation2], %s181
          %s183 = smul.u32 2, %s24
          %s185 = ssub.s32 512, 512
          %186 = vsyncadd %s179, %s185
          %s187 = smul.addr %s183, 2
          %s188 = smul.addr %s23, 16
          %s189 = sadd.s32 %s187, %s188
          %s190 = smul.addr %s189, 128
          %s191 = scalar_lea.hbm %s0, %s190
          %s192 = sshll.u32 %s182, 4
          %s193 = int_to_ptr.vmem [resolvable:$true] %s192
          %198 = dma.hbm_to_vmem [thread:$0]  %s191, 512, %s193, %s179, 128, 128, 8
        $region32: #{tpu_custom_call.1} parent=27 // pred_fallthru
          _
      $region28: #{tpu_custom_call.1} parent=5 // pred_fallthru
        _
      %p199 = scmp.le.s32.totalorder 1, %s16
      %p200 = scmp.lt.s32.totalorder %s16, 9
      %p201 = pnand %p199, %p200
      %p202 = pneg %p201
      // Predicated region
      $region33: #{tpu_custom_call.1} parent=5 // pred_check
        _
      $region34: #{tpu_custom_call.1} parent=5 // pred_check_branch
        %204 = sbr.rel (%p201) target = $region36
      $region35: #{tpu_custom_call.1} parent=5 // pred_region
        %s205 = ssub.s32 %s16, 1
        %s206 = sand.u32 %s43, 1
        %s207 = scalar_lea.sflag [#allocation3], %s206
        %s208 = sand.u32 %s43, 1
        %s209 = smul.addr %s208, 32
        %s210 = scalar_lea.vmem [#allocation2], %s209
        // Predicated region
        $region37: #{tpu_custom_call.1} parent=35 // pred_check
          %p211 = pneg %p56
        $region38: #{tpu_custom_call.1} parent=35 // pred_check_branch
          %213 = sbr.rel (%p211) target = $region40
        $region39: #{tpu_custom_call.1} parent=35 // pred_region
          %214 = dma.done %s207, 512
        $region40: #{tpu_custom_call.1} parent=35 // pred_fallthru
          _
        %s215 = sand.u32 %s43, 1
        %s216 = scalar_lea.sflag [#allocation3], %s215
        %s217 = sand.u32 %s43, 1
        %s218 = smul.addr %s217, 32
        %s219 = scalar_lea.vmem [#allocation2], %s218
        %p220 = pneg %p56
        %p221 = pneg %p53
        %p222 = pneg %p77
        %p223 = pneg %p74
        %p224 = pneg %p98
        %p225 = pneg %p95
        %p226 = pneg %p119
        %p227 = pneg %p116
        %p228 = pneg %p147
        %p229 = pneg %p144
        %s230 = sand.u32 %s134, 1
        %s231 = scalar_lea.sflag [#allocation4], %s230
        %s232 = sand.u32 %s134, 1
        %s233 = smul.addr %s232, 16
        %s234 = scalar_lea.vmem [#allocation5], %s233
        %s235 = smul.u32 2, %s26
        %s236 = smul.u32 2, %s26
        %v237 = vld [vmem:[%s210] sm:$0xff]
        %v238 = vld [vmem:[%s210 + $0x8] sm:$0xff]
        %v239 = vld [vmem:[%s210 + $0x10] sm:$0xff]
        %v240 = vld [vmem:[%s210 + $0x18] sm:$0xff]
        %v241 = vld [vmem:[%s1] sm:$0x1]
        %v243 = vlaneseq
        %v244 = vshrl.u32 %v243, 7
        %v245 = vsub.s32 0, %v244
        %v246 = vrot.slane %v241, %v245
        %v248 = vmul.f32 %v237, %v246
        %v249 = vmul.f32 %v238, %v246
        %v250 = vmul.f32 %v239, %v246
        %v251 = vmul.f32 %v240, %v246
        %v252 = vld [vmem:[%s2] sm:$0x1]
        %v254 = vlaneseq
        %v255 = vshrl.u32 %v254, 7
        %v256 = vsub.s32 0, %v255
        %v257 = vrot.slane %v252, %v256
        %v259 = vadd.f32 %v248, %v257
        %v260 = vadd.f32 %v249, %v257
        %v261 = vadd.f32 %v250, %v257
        %v262 = vadd.f32 %v251, %v257
        %v263 = vmin.f32 %v259, 20.0
        %v264 = vmin.f32 %v260, 20.0
        %v265 = vmin.f32 %v261, 20.0
        %v266 = vmin.f32 %v262, 20.0
        %v267 = vmul.f32 %v263, 1.442695
        %v268 = vpow.pop %v267
        %v269 = vmul.f32 %v264, 1.442695
        %v270 = vpow.pop %v269
        %v271 = vmul.f32 %v265, 1.442695
        %v272 = vpow.pop %v271
        %v273 = vmul.f32 %v266, 1.442695
        %v274 = vpow.pop %v273
        %v275 = vadd.f32 %v268, 2.0
        %v276 = vadd.f32 %v270, 2.0
        %v277 = vadd.f32 %v272, 2.0
        %v278 = vadd.f32 %v274, 2.0
        %v279 = vmul.f32 %v268, %v275
        %v280 = vmul.f32 %v270, %v276
        %v281 = vmul.f32 %v272, %v277
        %v282 = vmul.f32 %v274, %v278
        %v283 = vadd.f32 %v279, 2.0
        %v284 = vadd.f32 %v280, 2.0
        %v285 = vadd.f32 %v281, 2.0
        %v286 = vadd.f32 %v282, 2.0
        %v287 = vrcp.pop %v283
        %v288 = vmul.f32 %v279, %v287
        %v289 = vrcp.pop %v284
        %v290 = vmul.f32 %v280, %v289
        %v291 = vrcp.pop %v285
        %v292 = vmul.f32 %v281, %v291
        %v293 = vrcp.pop %v286
        %v294 = vmul.f32 %v282, %v293
        %vm295 = vcmp.gt.f32.partialorder %v259, 20.0
        %vm296 = vcmp.gt.f32.partialorder %v260, 20.0
        %vm297 = vcmp.gt.f32.partialorder %v261, 20.0
        %vm298 = vcmp.gt.f32.partialorder %v262, 20.0
        %v299 = vmul.f32 %v259, %v288
        %v300 = vmul.f32 %v260, %v290
        %v301 = vmul.f32 %v261, %v292
        %v302 = vmul.f32 %v262, %v294
        %v303 = vsel %vm295, %v259, %v299
        %v304 = vsel %vm296, %v260, %v300
        %v305 = vsel %vm297, %v261, %v301
        %v306 = vsel %vm298, %v262, %v302
        %v307 = vadd.f32 %v303, %v304
        %v308 = vadd.f32 %v305, %v306
        %311 = vrot.lane.b32.xlu0 %v307, 112
        %v312 = vpop.permute.xlu0 %311
        %313 = vrot.lane.b32.xlu0 %v308, 112
        %v314 = vpop.permute.xlu0 %313
        %v317 = vadd.f32 %v307, %v312
        %v318 = vadd.f32 %v308, %v314
        %v319 = vld [vmem:[%s3] sm:$0xff]
        %v320 = vld [vmem:[%s3 + $0x8] sm:$0xff]
        %vm321 = vcmask 130048
        %v323 = vsel %vm321, %v317, 0
        %v326 = vsel %vm321, %v318, 0
        %328 = vmatprep.subr.mxu0 0.0
        %329 = vmatpush1.msra.mxu0 0.0
        %330 = vmatprep.subr.mxu0 0.0
        %331 = vmatpush1.msra.mxu0 0.0
        %332 = vmatprep.subr.mxu0 0.0
        %333 = vmatpush1.msra.mxu0 0.0
        %334 = vmatprep.subr.mxu0 0.0
        %335 = vmatpush1.msra.mxu0 0.0
        %336 = vmatprep.subr.mxu0 0.0
        %337 = vmatpush1.msra.mxu0 0.0
        %338 = vmatprep.subr.mxu0 0.0
        %339 = vmatpush1.msra.mxu0 0.0
        %340 = vmatprep.subr.mxu0 0.0
        %341 = vmatpush1.msra.mxu0 0.0
        %342 = vmatprep.subr.mxu0 0.0
        %343 = vmatpush1.msra.mxu0 0.0
        %344 = vmatprep.subr.mxu0 0.0
        %345 = vmatpush1.msra.mxu0 0.0
        %346 = vmatprep.subr.mxu0 0.0
        %347 = vmatpush1.msra.mxu0 0.0
        %348 = vmatprep.subr.mxu0 0.0
        %349 = vmatpush1.msra.mxu0 0.0
        %350 = vmatprep.subr.mxu0 0.0
        %351 = vmatpush1.msra.mxu0 0.0
        %352 = vmatprep.subr.mxu0 0.0
        %353 = vmatpush1.msra.mxu0 0.0
        %354 = vmatprep.subr.mxu0 0.0
        %355 = vmatpush1.msra.mxu0 0.0
        %356 = vmatprep.subr.mxu0 0.0
        %357 = vmatpush1.msra.mxu0 %v320
        %358 = vmatprep.subr.mxu0 0.0
        %359 = vmatpush1.msra.mxu0 %v319
        %360 = vmatprep.subr.mxu0 0.0
        %361 = vmatpush2.msra.mxu0 0.0
        %362 = vmatprep.subr.mxu0 0.0
        %363 = vmatpush2.msra.mxu0 0.0
        %364 = vmatprep.subr.mxu0 0.0
        %365 = vmatpush2.msra.mxu0 0.0
        %366 = vmatprep.subr.mxu0 0.0
        %367 = vmatpush2.msra.mxu0 0.0
        %368 = vmatprep.subr.mxu0 0.0
        %369 = vmatpush2.msra.mxu0 0.0
        %370 = vmatprep.subr.mxu0 0.0
        %371 = vmatpush2.msra.mxu0 0.0
        %372 = vmatprep.subr.mxu0 0.0
        %373 = vmatpush2.msra.mxu0 0.0
        %374 = vmatprep.subr.mxu0 0.0
        %375 = vmatpush2.msra.mxu0 0.0
        %376 = vmatprep.subr.mxu0 0.0
        %377 = vmatpush2.msra.mxu0 0.0
        %378 = vmatprep.subr.mxu0 0.0
        %379 = vmatpush2.msra.mxu0 0.0
        %380 = vmatprep.subr.mxu0 0.0
        %381 = vmatpush2.msra.mxu0 0.0
        %382 = vmatprep.subr.mxu0 0.0
        %383 = vmatpush2.msra.mxu0 0.0
        %384 = vmatprep.subr.mxu0 0.0
        %385 = vmatpush2.msra.mxu0 0.0
        %386 = vmatprep.subr.mxu0 0.0
        %387 = vmatpush2.msra.mxu0 0.0
        %388 = vmatprep.subr.mxu0 0.0
        %389 = vmatpush2.msra.mxu0 0.0
        %390 = vmatprep.subr.mxu0 0.0
        %391 = vmatpush2.msra.mxu0 0.0
        %392 = vmatprep.mubr.f32.mxu0 0.0
        %393 = vmatmul.mubr.f32.gmra.mxu0 %v323
        %v394 = vpop.f32.mrf.mxu0
        %v395 = vadd.f32 0.0, %v394
        %v396 = vpop.f32.mrf.mxu0
        %397 = vmatprep.mubr.f32.mxu0 0.0
        %398 = vmatmul.mubr.f32.gmra.mxu0 %v326
        %v399 = vpop.f32.mrf.mxu0
        %v400 = vadd.f32 0.0, %v399
        %v401 = vpop.f32.mrf.mxu0
        %402 = vdwg.mxu0
        %vm403 = vcmask 64512
        %404 = vst.msk [vmem:[%s234] sm:$0xff] %vm403, %v395
        %405 = vst.msk [vmem:[%s234 + $0x8] sm:$0xff] %vm403, %v400
        %s406 = sand.u32 %s134, 1
        %s407 = scalar_lea.sflag [#allocation4], %s406
        %s408 = sand.u32 %s134, 1
        %s409 = smul.addr %s408, 16
        %s410 = scalar_lea.vmem [#allocation5], %s409
        // Predicated region
        $region41: #{tpu_custom_call.1} parent=35 // pred_check
          %p411 = pneg %p144
        $region42: #{tpu_custom_call.1} parent=35 // pred_check_branch
          %413 = sbr.rel (%p411) target = $region44
        $region43: #{tpu_custom_call.1} parent=35 // pred_region
          %s414 = smul.u32 2, %s26
          %s416 = ssub.s32 256, 256
          %417 = vsyncadd %s407, %s416
          %s418 = smul.addr %s25, 8
          %s419 = sadd.s32 %s414, %s418
          %s420 = smul.addr %s419, 128
          %s421 = scalar_lea.hbm %s4, %s420
          %s422 = sshll.u32 %s410, 4
          %s423 = int_to_ptr.vmem [resolvable:$true] %s422
          %428 = dma.vmem_to_hbm [thread:$0]  %s423, 256, %s421, %s407, 128, 128, 8
        $region44: #{tpu_custom_call.1} parent=35 // pred_fallthru
          _
      $region36: #{tpu_custom_call.1} parent=5 // pred_fallthru
        _
      %p429 = scmp.le.s32.totalorder 2, %s16
      // Predicated region
      $region45: #{tpu_custom_call.1} parent=5 // pred_check
        %p430 = pneg %p429
      $region46: #{tpu_custom_call.1} parent=5 // pred_check_branch
        %432 = sbr.rel (%p430) target = $region48
      $region47: #{tpu_custom_call.1} parent=5 // pred_region
        %s433 = ssub.s32 %s16, 2
        // Predicated region
        $region49: #{tpu_custom_call.1} parent=47 // pred_check
          %p434 = pneg %p150
        $region50: #{tpu_custom_call.1} parent=47 // pred_check_branch
          %436 = sbr.rel (%p434) target = $region52
        $region51: #{tpu_custom_call.1} parent=47 // pred_region
          %s437 = sand.u32 %s135, 1
          %s438 = scalar_lea.sflag [#allocation4], %s437
          %s439 = sand.u32 %s135, 1
          %s440 = smul.addr %s439, 16
          %s441 = scalar_lea.vmem [#allocation5], %s440
          %442 = dma.done %s438, 256
        $region52: #{tpu_custom_call.1} parent=47 // pred_fallthru
          _
      $region48: #{tpu_custom_call.1} parent=5 // pred_fallthru
        _
    $region6: #{tpu_custom_call.1} parent=1 // loop_footer
      %s20 = sadd.s32 1, %s16
    $region7: #{tpu_custom_call.1} parent=1 // loop_footer_branch
      %15 = sbr.rel target = $region3
    $region8: #{tpu_custom_call.1} parent=1 // loop_exit
      _
    %443 = vsyncpa [#allocation3], 1
    %s444 = scalar_lea.sflag [#allocation3], 1
    %445 = vsyncpa %s444, 1
    %446 = vsyncpa [#allocation4], 1
    %s447 = scalar_lea.sflag [#allocation4], 1
    %448 = vsyncpa %s447, 1

</llo_original>
